<compile_context>
chip_gen: v6e
topology: v6e:2x2x1
jax: 0.10.0
libtpu: 0.0.40
codegen_flags: <defaults>
</compile_context>

<pallas_src>
import functools

import jax
import jax.numpy as jnp
from jax.experimental import pallas as pl
from jax.experimental.pallas import tpu as pltpu


def _neat_kernel(a_ref, i1_ref, i2_ref, i3_ref, i4_ref, wt_ref, xt_ref, o_ref,
                 *, compute_dtype):
    """Grid = (num_parallel, n_r).

    Each (p, r) step takes one tile_r-column slab of weight^T, builds the
    transposed hidden activation hT (dim, tile_r) through the 6-layer chain
    (dim is the MXU M dimension, tile_r the lane dimension), and accumulates
    hT @ xT_tile into the resident f32 output block o_ref (dim, batch).
    The B^T projection and the cross-partition sum happen in the wrapper.
    """
    r = pl.program_id(1)

    relu = lambda v: jnp.maximum(v, 0.0)
    cast = lambda v: v.astype(compute_dtype)
    dot = lambda a, b: jnp.dot(a, b, preferred_element_type=jnp.float32)

    # (dim, out_dim) @ (out_dim, tile_r) -> (dim, tile_r); operands already in
    # compute_dtype (cast at the pallas_call boundary).  Activations stay f32.
    hT = relu(dot(a_ref[...], wt_ref[...]))
    residual = hT                                   # f32
    hT = relu(dot(i1_ref[...], cast(hT)))
    residual_ = hT                                  # f32
    hT = relu(dot(i2_ref[...], cast(hT)))
    hT = relu(dot(i3_ref[...], cast(hT)))
    hT = hT + residual_
    hT = relu(dot(i4_ref[...], cast(hT)))
    hT = hT + residual

    # (dim, tile_r) @ (tile_r, batch) -> (dim, batch), f32 accumulation.
    contrib = dot(cast(hT), xt_ref[...])

    @pl.when(r == 0)
    def _():
        o_ref[...] = contrib          # first R tile: plain store (no zero-fill)

    @pl.when(r != 0)
    def _():
        o_ref[...] += contrib         # later R tiles: accumulate in place


def _auto_num_parallel():
    """2 partitions only on multi-TensorCore chips (v7x); 1 elsewhere."""
    try:
        kind = jax.devices()[0].device_kind.lower()
    except Exception:  # pragma: no cover - defensive
        return 1
    return 2 if ("v7" in kind or "tpu7" in kind) else 1


@functools.partial(jax.jit, static_argnames=("tile_r", "num_parallel", "use_bf16"))
def neat_forward(x, weight, a_w, i1_w, i2_w, i3_w, i4_w, b_w, *,
                 tile_r=None, num_parallel=None, use_bf16=True):
    """x: (batch, R); weight: (R, out_dim); a_w: (dim, out_dim);
    i*_w: (dim, dim); b_w: (out_dim, dim) -- native nn.Linear layouts."""
    batch, R = x.shape
    R_w, out_dim = weight.shape
    dim = a_w.shape[0]
    assert R == R_w, "x and weight disagree on R"
    assert a_w.shape[1] == out_dim and b_w.shape == (out_dim, dim)

    if num_parallel is None:
        num_parallel = _auto_num_parallel()
        if R % num_parallel != 0:
            num_parallel = 1
    assert R % num_parallel == 0, "R must divide evenly across partitions"
    per_part = R // num_parallel

    if tile_r is None:
        cap = 1024 if use_bf16 else 512
        tile_r = per_part if per_part <= cap else cap
    assert per_part % tile_r == 0, "per-partition R must be a multiple of tile_r"
    assert tile_r == R or tile_r % 128 == 0, "tile_r must be lane-aligned (x128)"
    n_r = per_part // tile_r

    compute_dtype = jnp.bfloat16 if use_bf16 else jnp.float32

    # Transposed operands for the dim-as-M dataflow (layout plumbing in XLA).
    wT = weight.T          # (out_dim, R)
    xT = x.T               # (R, batch)
    if use_bf16:
        # bf16 MXU path; halves the dominant weight-stream HBM bytes.
        wT = wT.astype(jnp.bfloat16)
        xT = xT.astype(jnp.bfloat16)
        a_w, i1_w, i2_w, i3_w, i4_w = (
            m.astype(jnp.bfloat16) for m in (a_w, i1_w, i2_w, i3_w, i4_w))

    inv = lambda shape: pl.BlockSpec(shape, lambda p, r: (0, 0))

    partials = pl.pallas_call(
        functools.partial(_neat_kernel, compute_dtype=compute_dtype),
        out_shape=jax.ShapeDtypeStruct((num_parallel, dim, batch), jnp.float32),
        grid_spec=pltpu.PrefetchScalarGridSpec(
            num_scalar_prefetch=0,
            grid=(num_parallel, n_r),
            in_specs=[
                inv((dim, out_dim)),                                      # A
                inv((dim, dim)),                                          # i1
                inv((dim, dim)),                                          # i2
                inv((dim, dim)),                                          # i3
                inv((dim, dim)),                                          # i4
                pl.BlockSpec((out_dim, tile_r),
                             lambda p, r: (0, p * n_r + r)),              # weight^T
                pl.BlockSpec((tile_r, batch),
                             lambda p, r: (p * n_r + r, 0)),              # x^T
            ],
            out_specs=pl.BlockSpec((None, dim, batch), lambda p, r: (p, 0, 0)),
        ),
        compiler_params=pltpu.CompilerParams(
            dimension_semantics=("parallel", "arbitrary")),
    )(a_w, i1_w, i2_w, i3_w, i4_w, wT, xT)

    # Cross-partition reduction in f32 (no-op cost for num_parallel == 1),
    # then the hoisted B^T projection, done once in XLA in full precision.
    accT = jnp.sum(partials, axis=0)                       # (dim, batch) f32
    out = jnp.dot(accT.T, b_w.T,
                  preferred_element_type=jnp.float32,
                  precision=jax.lax.Precision.HIGHEST)      # (batch, out_dim)
    return out.astype(x.dtype)


def neat_reference(x, weight, a_w, i1_w, i2_w, i3_w, i4_w, b_w):
    relu = lambda v: jnp.maximum(v, 0.0)
    h = relu(weight @ a_w.T)
    residual = h
    h = relu(h @ i1_w.T)
    residual_ = h
    h = relu(h @ i2_w.T)
    h = relu(h @ i3_w.T)
    h = h + residual_
    h = relu(h @ i4_w.T)
    h = h + residual
    dw = h @ b_w.T
    return x @ dw


if __name__ == "__main__":
    dim, out_dim = 32, 768          # module defaults
    batch, R = 8, 256               # small, tile-friendly problem size
    key = jax.random.PRNGKey(0)
    ks = jax.random.split(key, 8)

    x = jax.random.normal(ks[0], (batch, R), jnp.float32)
    weight = jax.random.normal(ks[1], (R, out_dim), jnp.float32) * 0.05

    # Parameters in native nn.Linear (out_features, in_features) layout.
    a_w = jax.random.normal(ks[2], (dim, out_dim), jnp.float32) * 0.05
    i1_w = jax.random.normal(ks[3], (dim, dim), jnp.float32) * 0.2
    i2_w = jax.random.normal(ks[4], (dim, dim), jnp.float32) * 0.2
    i3_w = jax.random.normal(ks[5], (dim, dim), jnp.float32) * 0.2
    i4_w = jax.random.normal(ks[6], (dim, dim), jnp.float32) * 0.2
    # NOTE: PyTorch module zero-inits B.weight (output would be trivially 0);
    # we use a deterministic nonzero init so the kernel path is exercised.
    b_w = jax.random.normal(ks[7], (out_dim, dim), jnp.float32) * 0.05

    ref = neat_reference(x, weight, a_w, i1_w, i2_w, i3_w, i4_w, b_w)

    # 1) f32 path, auto num_parallel (1 on v5e/v6e, 2 on v7x).
    out_f32 = jax.block_until_ready(
        neat_forward(x, weight, a_w, i1_w, i2_w, i3_w, i4_w, b_w,
                     use_bf16=False))
    assert out_f32.shape == (batch, out_dim)
    assert jnp.allclose(out_f32, ref, atol=1e-3, rtol=1e-3), "f32 mismatch"

    # 2) f32 path, tile_r=128 -> exercises the in-kernel r-axis accumulation.
    out_tiled = jax.block_until_ready(
        neat_forward(x, weight, a_w, i1_w, i2_w, i3_w, i4_w, b_w,
                     tile_r=128, num_parallel=1, use_bf16=False))
    assert jnp.allclose(out_tiled, ref, atol=1e-3, rtol=1e-3), "tiled f32 mismatch"

    # 3) explicit 2-partition path (megacore on v7x; sequential elsewhere).
    out_par = jax.block_until_ready(
        neat_forward(x, weight, a_w, i1_w, i2_w, i3_w, i4_w, b_w,
                     num_parallel=2, use_bf16=False))
    assert jnp.allclose(out_par, ref, atol=1e-3, rtol=1e-3), "parallel f32 mismatch"

    # 4) default bf16 MXU path (f32 accumulation / residuals in-kernel, f32
    #    partials + f32 B projection outside).  Error compounds across the six
    #    bf16 contractions; ~1e-2 relative drift is expected and tolerated.
    out_bf16 = jax.block_until_ready(
        neat_forward(x, weight, a_w, i1_w, i2_w, i3_w, i4_w, b_w))
    assert jnp.allclose(out_bf16, ref, atol=5e-2, rtol=5e-2), "bf16 mismatch"

    print("KERNEL_OK")
</pallas_src>

<mosaic_0001>
module attributes {stable_mosaic.version = 11 : i64} {
  func.func @_neat_kernel(%arg0: i32, %arg1: i32, %arg2: memref<32x768xf32, #tpu.memory_space<vmem>>, %arg3: memref<32x32xf32, #tpu.memory_space<vmem>>, %arg4: memref<32x32xf32, #tpu.memory_space<vmem>>, %arg5: memref<32x32xf32, #tpu.memory_space<vmem>>, %arg6: memref<32x32xf32, #tpu.memory_space<vmem>>, %arg7: memref<768x256xf32, #tpu.memory_space<vmem>>, %arg8: memref<256x8xf32, #tpu.memory_space<vmem>>, %arg9: memref<1x32x8xf32, #tpu.memory_space<vmem>>) attributes {dimension_semantics = [#tpu.dimension_semantics<parallel>, #tpu.dimension_semantics<arbitrary>], iteration_bounds = array<i64: 1, 1>, scalar_prefetch = 0 : i64, scratch_operands = 0 : i64, tpu.core_type = #tpu.core_type<tc>, window_params = [{pipeline_mode = #tpu.pipeline_mode<synchronous>, transform_indices = @transform_0, window_bounds = array<i64: 32, 768>}, {pipeline_mode = #tpu.pipeline_mode<synchronous>, transform_indices = @transform_1, window_bounds = array<i64: 32, 32>}, {pipeline_mode = #tpu.pipeline_mode<synchronous>, transform_indices = @transform_2, window_bounds = array<i64: 32, 32>}, {pipeline_mode = #tpu.pipeline_mode<synchronous>, transform_indices = @transform_3, window_bounds = array<i64: 32, 32>}, {pipeline_mode = #tpu.pipeline_mode<synchronous>, transform_indices = @transform_4, window_bounds = array<i64: 32, 32>}, {transform_indices = @transform_5, window_bounds = array<i64: 768, 256>}, {transform_indices = @transform_6, window_bounds = array<i64: 256, 8>}, {transform_indices = @transform_7, window_bounds = array<i64: 1, 32, 8>}]} {
    %c0 = arith.constant 0 : index
    %c0_0 = arith.constant 0 : index
    %0 = vector.load %arg2[%c0, %c0_0] : memref<32x768xf32, #tpu.memory_space<vmem>>, vector<32x768xf32>
    %c0_1 = arith.constant 0 : index
    %c0_2 = arith.constant 0 : index
    %1 = vector.load %arg7[%c0_1, %c0_2] : memref<768x256xf32, #tpu.memory_space<vmem>>, vector<768x256xf32>
    %cst = arith.constant dense<0.000000e+00> : vector<32x256xf32>
    %2 = tpu.matmul %0, %1, %cst {dimension_numbers = #tpu.dot_dimension_numbers<[1], [0], [0], [1], [0, 0, 1, 1], [], []>} : vector<32x768xf32>, vector<768x256xf32>, vector<32x256xf32> -> vector<32x256xf32>
    %cst_3 = arith.constant 0.000000e+00 : f32
    %3 = vector.broadcast %cst_3 : f32 to vector<32x256xf32>
    %4 = arith.maximumf %2, %3 : vector<32x256xf32>
    %c0_4 = arith.constant 0 : index
    %c0_5 = arith.constant 0 : index
    %5 = vector.load %arg3[%c0_4, %c0_5] : memref<32x32xf32, #tpu.memory_space<vmem>>, vector<32x32xf32>
    %cst_6 = arith.constant dense<0.000000e+00> : vector<32x256xf32>
    %6 = tpu.matmul %5, %4, %cst_6 {dimension_numbers = #tpu.dot_dimension_numbers<[1], [0], [0], [1], [0, 0, 1, 1], [], []>} : vector<32x32xf32>, vector<32x256xf32>, vector<32x256xf32> -> vector<32x256xf32>
    %cst_7 = arith.constant 0.000000e+00 : f32
    %7 = vector.broadcast %cst_7 : f32 to vector<32x256xf32>
    %8 = arith.maximumf %6, %7 : vector<32x256xf32>
    %c0_8 = arith.constant 0 : index
    %c0_9 = arith.constant 0 : index
    %9 = vector.load %arg4[%c0_8, %c0_9] : memref<32x32xf32, #tpu.memory_space<vmem>>, vector<32x32xf32>
    %cst_10 = arith.constant dense<0.000000e+00> : vector<32x256xf32>
    %10 = tpu.matmul %9, %8, %cst_10 {dimension_numbers = #tpu.dot_dimension_numbers<[1], [0], [0], [1], [0, 0, 1, 1], [], []>} : vector<32x32xf32>, vector<32x256xf32>, vector<32x256xf32> -> vector<32x256xf32>
    %cst_11 = arith.constant 0.000000e+00 : f32
    %11 = vector.broadcast %cst_11 : f32 to vector<32x256xf32>
    %12 = arith.maximumf %10, %11 : vector<32x256xf32>
    %c0_12 = arith.constant 0 : index
    %c0_13 = arith.constant 0 : index
    %13 = vector.load %arg5[%c0_12, %c0_13] : memref<32x32xf32, #tpu.memory_space<vmem>>, vector<32x32xf32>
    %cst_14 = arith.constant dense<0.000000e+00> : vector<32x256xf32>
    %14 = tpu.matmul %13, %12, %cst_14 {dimension_numbers = #tpu.dot_dimension_numbers<[1], [0], [0], [1], [0, 0, 1, 1], [], []>} : vector<32x32xf32>, vector<32x256xf32>, vector<32x256xf32> -> vector<32x256xf32>
    %cst_15 = arith.constant 0.000000e+00 : f32
    %15 = vector.broadcast %cst_15 : f32 to vector<32x256xf32>
    %16 = arith.maximumf %14, %15 : vector<32x256xf32>
    %17 = arith.addf %16, %8 : vector<32x256xf32>
    %c0_16 = arith.constant 0 : index
    %c0_17 = arith.constant 0 : index
    %18 = vector.load %arg6[%c0_16, %c0_17] : memref<32x32xf32, #tpu.memory_space<vmem>>, vector<32x32xf32>
    %cst_18 = arith.constant dense<0.000000e+00> : vector<32x256xf32>
    %19 = tpu.matmul %18, %17, %cst_18 {dimension_numbers = #tpu.dot_dimension_numbers<[1], [0], [0], [1], [0, 0, 1, 1], [], []>} : vector<32x32xf32>, vector<32x256xf32>, vector<32x256xf32> -> vector<32x256xf32>
    %cst_19 = arith.constant 0.000000e+00 : f32
    %20 = vector.broadcast %cst_19 : f32 to vector<32x256xf32>
    %21 = arith.maximumf %19, %20 : vector<32x256xf32>
    %22 = arith.addf %21, %4 : vector<32x256xf32>
    %c0_20 = arith.constant 0 : index
    %c0_21 = arith.constant 0 : index
    %23 = vector.load %arg8[%c0_20, %c0_21] : memref<256x8xf32, #tpu.memory_space<vmem>>, vector<256x8xf32>
    %cst_22 = arith.constant dense<0.000000e+00> : vector<32x8xf32>
    %24 = tpu.matmul %22, %23, %cst_22 {dimension_numbers = #tpu.dot_dimension_numbers<[1], [0], [0], [1], [0, 0, 1, 1], [], []>} : vector<32x256xf32>, vector<256x8xf32>, vector<32x8xf32> -> vector<32x8xf32>
    %c0_i32 = arith.constant 0 : i32
    %25 = arith.cmpi eq, %arg1, %c0_i32 : i32
    %26 = arith.extui %25 : i1 to i32
    %c0_i32_23 = arith.constant 0 : i32
    %27 = arith.cmpi ne, %26, %c0_i32_23 : i32
    scf.if %27 {
      %c0_26 = arith.constant 0 : index
      %c0_27 = arith.constant 0 : index
      %c0_28 = arith.constant 0 : index
      %31 = vector.load %arg9[%c0_26, %c0_27, %c0_28] : memref<1x32x8xf32, #tpu.memory_space<vmem>>, vector<1x32x8xf32>
      %32 = vector.shape_cast %31 : vector<1x32x8xf32> to vector<32x8xf32>
      %33 = vector.shape_cast %24 : vector<32x8xf32> to vector<1x32x8xf32>
      tpu.vector_store %arg9[%c0_26, %c0_27, %c0_28], %33 {strides = array<i32>} : memref<1x32x8xf32, #tpu.memory_space<vmem>>, vector<1x32x8xf32>,
    } else {
    }
    %c0_i32_24 = arith.constant 0 : i32
    %28 = arith.cmpi ne, %arg1, %c0_i32_24 : i32
    %29 = arith.extui %28 : i1 to i32
    %c0_i32_25 = arith.constant 0 : i32
    %30 = arith.cmpi ne, %29, %c0_i32_25 : i32
    scf.if %30 {
      %c0_26 = arith.constant 0 : index
      %c0_27 = arith.constant 0 : index
      %c0_28 = arith.constant 0 : index
      %31 = vector.load %arg9[%c0_26, %c0_27, %c0_28] : memref<1x32x8xf32, #tpu.memory_space<vmem>>, vector<1x32x8xf32>
      %32 = vector.shape_cast %31 : vector<1x32x8xf32> to vector<32x8xf32>
      %33 = arith.addf %32, %24 : vector<32x8xf32>
      %c0_29 = arith.constant 0 : index
      %c0_30 = arith.constant 0 : index
      %c0_31 = arith.constant 0 : index
      %34 = vector.load %arg9[%c0_29, %c0_30, %c0_31] : memref<1x32x8xf32, #tpu.memory_space<vmem>>, vector<1x32x8xf32>
      %35 = vector.shape_cast %34 : vector<1x32x8xf32> to vector<32x8xf32>
      %36 = vector.shape_cast %33 : vector<32x8xf32> to vector<1x32x8xf32>
      tpu.vector_store %arg9[%c0_29, %c0_30, %c0_31], %36 {strides = array<i32>} : memref<1x32x8xf32, #tpu.memory_space<vmem>>, vector<1x32x8xf32>,
    } else {
    }
    return
  }
  func.func @transform_0(%arg0: i32, %arg1: i32) -> (i32, i32) {
    %c0_i32 = arith.constant 0 : i32
    %c0_i32_0 = arith.constant 0 : i32
    %c0_i32_1 = arith.constant 0 : i32
    return %c0_i32, %c0_i32_0 : i32, i32
  }
  func.func @transform_1(%arg0: i32, %arg1: i32) -> (i32, i32) {
    %c0_i32 = arith.constant 0 : i32
    %c0_i32_0 = arith.constant 0 : i32
    %c0_i32_1 = arith.constant 0 : i32
    return %c0_i32, %c0_i32_0 : i32, i32
  }
  func.func @transform_2(%arg0: i32, %arg1: i32) -> (i32, i32) {
    %c0_i32 = arith.constant 0 : i32
    %c0_i32_0 = arith.constant 0 : i32
    %c0_i32_1 = arith.constant 0 : i32
    return %c0_i32, %c0_i32_0 : i32, i32
  }
  func.func @transform_3(%arg0: i32, %arg1: i32) -> (i32, i32) {
    %c0_i32 = arith.constant 0 : i32
    %c0_i32_0 = arith.constant 0 : i32
    %c0_i32_1 = arith.constant 0 : i32
    return %c0_i32, %c0_i32_0 : i32, i32
  }
  func.func @transform_4(%arg0: i32, %arg1: i32) -> (i32, i32) {
    %c0_i32 = arith.constant 0 : i32
    %c0_i32_0 = arith.constant 0 : i32
    %c0_i32_1 = arith.constant 0 : i32
    return %c0_i32, %c0_i32_0 : i32, i32
  }
  func.func @transform_5(%arg0: i32, %arg1: i32) -> (i32, i32) {
    %c1_i32 = arith.constant 1 : i32
    %0 = arith.muli %arg0, %c1_i32 : i32
    %1 = arith.addi %0, %arg1 : i32
    %c0_i32 = arith.constant 0 : i32
    %c0_i32_0 = arith.constant 0 : i32
    return %c0_i32, %1 : i32, i32
  }
  func.func @transform_6(%arg0: i32, %arg1: i32) -> (i32, i32) {
    %c1_i32 = arith.constant 1 : i32
    %0 = arith.muli %arg0, %c1_i32 : i32
    %1 = arith.addi %0, %arg1 : i32
    %c0_i32 = arith.constant 0 : i32
    %c0_i32_0 = arith.constant 0 : i32
    return %1, %c0_i32 : i32, i32
  }
  func.func @transform_7(%arg0: i32, %arg1: i32) -> (i32, i32, i32) {
    %c0_i32 = arith.constant 0 : i32
    %c0_i32_0 = arith.constant 0 : i32
    %c0_i32_1 = arith.constant 0 : i32
    return %arg0, %c0_i32, %c0_i32_0 : i32, i32, i32
  }
}

</mosaic_0001>

<llo_original>
// kernel: neat_forward.1
$region0: #{neat_forward.1}
  #allocation0 [shape = 'u32[]', space=smem, size = 0x4, offset = 0x4, fixed_abs, tag = 'smem constant byte address 0x4 - core index']
  #allocation1 [shape = 'u32[144,128]{1,0:T(1,128)}', space=vmem, size = 0x12000, scoped, tag = 'internal scratch']
  %s0 = inlined_call_operand.vmem [shape: f32[32,768], index: 0, kind: input, shape index: {}]
  %s1 = inlined_call_operand.vmem [shape: f32[32,32], index: 1, kind: input, shape index: {}]
  %s2 = inlined_call_operand.vmem [shape: f32[32,32], index: 2, kind: input, shape index: {}]
  %s3 = inlined_call_operand.vmem [shape: f32[32,32], index: 3, kind: input, shape index: {}]
  %s4 = inlined_call_operand.vmem [shape: f32[32,32], index: 4, kind: input, shape index: {}]
  %s5 = inlined_call_operand.vmem [shape: f32[768,256], index: 5, kind: input, shape index: {}]
  %s6 = inlined_call_operand.vmem [shape: f32[256,8], index: 6, kind: input, shape index: {}]
  %s7 = inlined_call_operand.vmem [shape: f32[1,32,8], index: 7, kind: output, shape index: {}]
  %s8 = sld [smem:[#allocation0]]
  $region46: #{neat_forward.1} parent=0
    _
  %s10 = ssub.s32 1, %s8
  %s11 = scalar_select 0, %s10, %s8
  // Predicated region
  $region2: #{neat_forward.1} parent=0 // pred_check
    _
  $region3: #{neat_forward.1} parent=0 // pred_check_branch
    %13 = sbr.rel (0) target = $region5
  $region4: #{neat_forward.1} parent=0 // pred_region
    _
  $region5: #{neat_forward.1} parent=0 // pred_fallthru
    _
  // Predicated region
  $region6: #{neat_forward.1} parent=0 // pred_check
    _
  $region7: #{neat_forward.1} parent=0 // pred_check_branch
    %15 = sbr.rel (0) target = $region9
  $region8: #{neat_forward.1} parent=0 // pred_region
    _
  $region9: #{neat_forward.1} parent=0 // pred_fallthru
    _
  // Predicated region
  $region10: #{neat_forward.1} parent=0 // pred_check
    _
  $region11: #{neat_forward.1} parent=0 // pred_check_branch
    %17 = sbr.rel (0) target = $region13
  $region12: #{neat_forward.1} parent=0 // pred_region
    _
  $region13: #{neat_forward.1} parent=0 // pred_fallthru
    _
  // Predicated region
  $region14: #{neat_forward.1} parent=0 // pred_check
    _
  $region15: #{neat_forward.1} parent=0 // pred_check_branch
    %19 = sbr.rel (0) target = $region17
  $region16: #{neat_forward.1} parent=0 // pred_region
    _
  $region17: #{neat_forward.1} parent=0 // pred_fallthru
    _
  // Predicated region
  $region18: #{neat_forward.1} parent=0 // pred_check
    _
  $region19: #{neat_forward.1} parent=0 // pred_check_branch
    %21 = sbr.rel (0) target = $region21
  $region20: #{neat_forward.1} parent=0 // pred_region
    _
  $region21: #{neat_forward.1} parent=0 // pred_fallthru
    _
  // Predicated region
  $region22: #{neat_forward.1} parent=0 // pred_check
    _
  $region23: #{neat_forward.1} parent=0 // pred_check_branch
    %23 = sbr.rel (0) target = $region25
  $region24: #{neat_forward.1} parent=0 // pred_region
    %s24 = sadd.s32 0, 0
    %s25 = smul.u32 2, %s24
    %p26 = scmp.lt.s32.totalorder %s25, 1
    %s27 = scalar_select %p26, %s25, 1
    %s28 = smul.addr %s27, 8
    %s29 = scalar_lea.vmem %s5, %s28
    %s30 = sadd.s32 0, 0
    %s31 = smul.u32 2, %s30
  $region25: #{neat_forward.1} parent=0 // pred_fallthru
    _
  // Predicated region
  $region26: #{neat_forward.1} parent=0 // pred_check
    _
  $region27: #{neat_forward.1} parent=0 // pred_check_branch
    %33 = sbr.rel (0) target = $region29
  $region28: #{neat_forward.1} parent=0 // pred_region
    %s34 = sadd.s32 0, 0
    %s35 = smul.u32 32, %s34
    %p36 = scmp.lt.s32.totalorder %s35, 31
    %s37 = scalar_select %p36, %s35, 31
    %s38 = smul.addr %s37, 8
    %s39 = scalar_lea.vmem %s6, %s38
    %s40 = sadd.s32 0, 0
    %s41 = smul.u32 32, %s40
  $region29: #{neat_forward.1} parent=0 // pred_fallthru
    _
  %s42 = sadd.s32 0, 0
  %s43 = smul.u32 2, %s42
  %p44 = scmp.lt.s32.totalorder %s43, 1
  %s45 = scalar_select %p44, %s43, 1
  %s46 = smul.addr %s45, 8
  %s47 = scalar_lea.vmem %s5, %s46
  %s48 = sadd.s32 0, 0
  %s49 = smul.u32 32, %s48
  %p50 = scmp.lt.s32.totalorder %s49, 31
  %s51 = scalar_select %p50, %s49, 31
  %s52 = smul.addr %s51, 8
  %s53 = scalar_lea.vmem %s6, %s52
  %s54 = sadd.s32 0, 0
  %s55 = smul.u32 2, %s54
  %p56 = scmp.lt.s32.totalorder %s55, 1
  %s57 = scalar_select %p56, %s55, 1
  %s58 = smul.addr %s57, 8
  %s59 = scalar_lea.vmem %s5, %s58
  %s60 = sadd.s32 0, 0
  %s61 = smul.u32 2, %s60
  %s62 = sadd.s32 0, 0
  %s63 = smul.u32 32, %s62
  %p64 = scmp.lt.s32.totalorder %s63, 31
  %s65 = scalar_select %p64, %s63, 31
  %s66 = smul.addr %s65, 8
  %s67 = scalar_lea.vmem %s6, %s66
  %s68 = sadd.s32 0, 0
  %s69 = smul.u32 32, %s68
  %v70 = vld [vmem:[%s0] sm:$0xff]
  %v71 = vld [vmem:[%s0 + $0x8] sm:$0xff]
  %v72 = vld [vmem:[%s0 + $0x10] sm:$0xff]
  %v73 = vld [vmem:[%s0 + $0x18] sm:$0xff]
  %v74 = vld [vmem:[%s0 + $0x20] sm:$0xff]
  %v75 = vld [vmem:[%s0 + $0x28] sm:$0xff]
  %v76 = vld [vmem:[%s0 + $0x30] sm:$0xff]
  %v77 = vld [vmem:[%s0 + $0x38] sm:$0xff]
  %v78 = vld [vmem:[%s0 + $0x40] sm:$0xff]
  %v79 = vld [vmem:[%s0 + $0x48] sm:$0xff]
  %v80 = vld [vmem:[%s0 + $0x50] sm:$0xff]
  %v81 = vld [vmem:[%s0 + $0x58] sm:$0xff]
  %v82 = vld [vmem:[%s0 + $0x60] sm:$0xff]
  %v83 = vld [vmem:[%s0 + $0x68] sm:$0xff]
  %v84 = vld [vmem:[%s0 + $0x70] sm:$0xff]
  %v85 = vld [vmem:[%s0 + $0x78] sm:$0xff]
  %v86 = vld [vmem:[%s0 + $0x80] sm:$0xff]
  %v87 = vld [vmem:[%s0 + $0x88] sm:$0xff]
  %v88 = vld [vmem:[%s0 + $0x90] sm:$0xff]
  %v89 = vld [vmem:[%s0 + $0x98] sm:$0xff]
  %v90 = vld [vmem:[%s0 + $0xa0] sm:$0xff]
  %v91 = vld [vmem:[%s0 + $0xa8] sm:$0xff]
  %v92 = vld [vmem:[%s0 + $0xb0] sm:$0xff]
  %v93 = vld [vmem:[%s0 + $0xb8] sm:$0xff]
  %v94 = vld [vmem:[%s59] sm:$0xff]
  %v95 = vld [vmem:[%s59 + $0x8] sm:$0xff]
  %v96 = vld [vmem:[%s59 + $0x10] sm:$0xff]
  %v97 = vld [vmem:[%s59 + $0x18] sm:$0xff]
  %v98 = vld [vmem:[%s59 + $0x20] sm:$0xff]
  %v99 = vld [vmem:[%s59 + $0x28] sm:$0xff]
  %v100 = vld [vmem:[%s59 + $0x30] sm:$0xff]
  %v101 = vld [vmem:[%s59 + $0x38] sm:$0xff]
  %v102 = vld [vmem:[%s59 + $0x40] sm:$0xff]
  %v103 = vld [vmem:[%s59 + $0x48] sm:$0xff]
  %v104 = vld [vmem:[%s59 + $0x50] sm:$0xff]
  %v105 = vld [vmem:[%s59 + $0x58] sm:$0xff]
  %v106 = vld [vmem:[%s59 + $0x60] sm:$0xff]
  %v107 = vld [vmem:[%s59 + $0x68] sm:$0xff]
  %v108 = vld [vmem:[%s59 + $0x70] sm:$0xff]
  %v109 = vld [vmem:[%s59 + $0x78] sm:$0xff]
  %v110 = vld [vmem:[%s59 + $0x80] sm:$0xff]
  %v111 = vld [vmem:[%s59 + $0x88] sm:$0xff]
  %v112 = vld [vmem:[%s59 + $0x90] sm:$0xff]
  %v113 = vld [vmem:[%s59 + $0x98] sm:$0xff]
  %v114 = vld [vmem:[%s59 + $0xa0] sm:$0xff]
  %v115 = vld [vmem:[%s59 + $0xa8] sm:$0xff]
  %v116 = vld [vmem:[%s59 + $0xb0] sm:$0xff]
  %v117 = vld [vmem:[%s59 + $0xb8] sm:$0xff]
  %v118 = vld [vmem:[%s59 + $0xc0] sm:$0xff]
  %v119 = vld [vmem:[%s59 + $0xc8] sm:$0xff]
  %v120 = vld [vmem:[%s59 + $0xd0] sm:$0xff]
  %v121 = vld [vmem:[%s59 + $0xd8] sm:$0xff]
  %v122 = vld [vmem:[%s59 + $0xe0] sm:$0xff]
  %v123 = vld [vmem:[%s59 + $0xe8] sm:$0xff]
  %v124 = vld [vmem:[%s59 + $0xf0] sm:$0xff]
  %v125 = vld [vmem:[%s59 + $0xf8] sm:$0xff]
  %v126 = vld [vmem:[%s59 + $0x100] sm:$0xff]
  %v127 = vld [vmem:[%s59 + $0x108] sm:$0xff]
  %v128 = vld [vmem:[%s59 + $0x110] sm:$0xff]
  %v129 = vld [vmem:[%s59 + $0x118] sm:$0xff]
  %v130 = vld [vmem:[%s59 + $0x120] sm:$0xff]
  %v131 = vld [vmem:[%s59 + $0x128] sm:$0xff]
  %v132 = vld [vmem:[%s59 + $0x130] sm:$0xff]
  %v133 = vld [vmem:[%s59 + $0x138] sm:$0xff]
  %v134 = vld [vmem:[%s59 + $0x140] sm:$0xff]
  %v135 = vld [vmem:[%s59 + $0x148] sm:$0xff]
  %v136 = vld [vmem:[%s59 + $0x150] sm:$0xff]
  %v137 = vld [vmem:[%s59 + $0x158] sm:$0xff]
  %v138 = vld [vmem:[%s59 + $0x160] sm:$0xff]
  %v139 = vld [vmem:[%s59 + $0x168] sm:$0xff]
  %v140 = vld [vmem:[%s59 + $0x170] sm:$0xff]
  %v141 = vld [vmem:[%s59 + $0x178] sm:$0xff]
  %v142 = vld [vmem:[%s59 + $0x180] sm:$0xff]
  %v143 = vld [vmem:[%s59 + $0x188] sm:$0xff]
  %v144 = vld [vmem:[%s59 + $0x190] sm:$0xff]
  %v145 = vld [vmem:[%s59 + $0x198] sm:$0xff]
  %v146 = vld [vmem:[%s59 + $0x1a0] sm:$0xff]
  %v147 = vld [vmem:[%s59 + $0x1a8] sm:$0xff]
  %v148 = vld [vmem:[%s59 + $0x1b0] sm:$0xff]
  %v149 = vld [vmem:[%s59 + $0x1b8] sm:$0xff]
  %v150 = vld [vmem:[%s59 + $0x1c0] sm:$0xff]
  %v151 = vld [vmem:[%s59 + $0x1c8] sm:$0xff]
  %v152 = vld [vmem:[%s59 + $0x1d0] sm:$0xff]
  %v153 = vld [vmem:[%s59 + $0x1d8] sm:$0xff]
  %v154 = vld [vmem:[%s59 + $0x1e0] sm:$0xff]
  %v155 = vld [vmem:[%s59 + $0x1e8] sm:$0xff]
  %v156 = vld [vmem:[%s59 + $0x1f0] sm:$0xff]
  %v157 = vld [vmem:[%s59 + $0x1f8] sm:$0xff]
  %v158 = vld [vmem:[%s59 + $0x200] sm:$0xff]
  %v159 = vld [vmem:[%s59 + $0x208] sm:$0xff]
  %v160 = vld [vmem:[%s59 + $0x210] sm:$0xff]
  %v161 = vld [vmem:[%s59 + $0x218] sm:$0xff]
  %v162 = vld [vmem:[%s59 + $0x220] sm:$0xff]
  %v163 = vld [vmem:[%s59 + $0x228] sm:$0xff]
  %v164 = vld [vmem:[%s59 + $0x230] sm:$0xff]
  %v165 = vld [vmem:[%s59 + $0x238] sm:$0xff]
  %v166 = vld [vmem:[%s59 + $0x240] sm:$0xff]
  %v167 = vld [vmem:[%s59 + $0x248] sm:$0xff]
  %v168 = vld [vmem:[%s59 + $0x250] sm:$0xff]
  %v169 = vld [vmem:[%s59 + $0x258] sm:$0xff]
  %v170 = vld [vmem:[%s59 + $0x260] sm:$0xff]
  %v171 = vld [vmem:[%s59 + $0x268] sm:$0xff]
  %v172 = vld [vmem:[%s59 + $0x270] sm:$0xff]
  %v173 = vld [vmem:[%s59 + $0x278] sm:$0xff]
  %v174 = vld [vmem:[%s59 + $0x280] sm:$0xff]
  %v175 = vld [vmem:[%s59 + $0x288] sm:$0xff]
  %v176 = vld [vmem:[%s59 + $0x290] sm:$0xff]
  %v177 = vld [vmem:[%s59 + $0x298] sm:$0xff]
  %v178 = vld [vmem:[%s59 + $0x2a0] sm:$0xff]
  %v179 = vld [vmem:[%s59 + $0x2a8] sm:$0xff]
  %v180 = vld [vmem:[%s59 + $0x2b0] sm:$0xff]
  %v181 = vld [vmem:[%s59 + $0x2b8] sm:$0xff]
  %v182 = vld [vmem:[%s59 + $0x2c0] sm:$0xff]
  %v183 = vld [vmem:[%s59 + $0x2c8] sm:$0xff]
  %v184 = vld [vmem:[%s59 + $0x2d0] sm:$0xff]
  %v185 = vld [vmem:[%s59 + $0x2d8] sm:$0xff]
  %v186 = vld [vmem:[%s59 + $0x2e0] sm:$0xff]
  %v187 = vld [vmem:[%s59 + $0x2e8] sm:$0xff]
  %v188 = vld [vmem:[%s59 + $0x2f0] sm:$0xff]
  %v189 = vld [vmem:[%s59 + $0x2f8] sm:$0xff]
  %v190 = vld [vmem:[%s59 + $0x300] sm:$0xff]
  %v191 = vld [vmem:[%s59 + $0x308] sm:$0xff]
  %v192 = vld [vmem:[%s59 + $0x310] sm:$0xff]
  %v193 = vld [vmem:[%s59 + $0x318] sm:$0xff]
  %v194 = vld [vmem:[%s59 + $0x320] sm:$0xff]
  %v195 = vld [vmem:[%s59 + $0x328] sm:$0xff]
  %v196 = vld [vmem:[%s59 + $0x330] sm:$0xff]
  %v197 = vld [vmem:[%s59 + $0x338] sm:$0xff]
  %v198 = vld [vmem:[%s59 + $0x340] sm:$0xff]
  %v199 = vld [vmem:[%s59 + $0x348] sm:$0xff]
  %v200 = vld [vmem:[%s59 + $0x350] sm:$0xff]
  %v201 = vld [vmem:[%s59 + $0x358] sm:$0xff]
  %v202 = vld [vmem:[%s59 + $0x360] sm:$0xff]
  %v203 = vld [vmem:[%s59 + $0x368] sm:$0xff]
  %v204 = vld [vmem:[%s59 + $0x370] sm:$0xff]
  %v205 = vld [vmem:[%s59 + $0x378] sm:$0xff]
  %v206 = vld [vmem:[%s59 + $0x380] sm:$0xff]
  %v207 = vld [vmem:[%s59 + $0x388] sm:$0xff]
  %v208 = vld [vmem:[%s59 + $0x390] sm:$0xff]
  %v209 = vld [vmem:[%s59 + $0x398] sm:$0xff]
  %v210 = vld [vmem:[%s59 + $0x3a0] sm:$0xff]
  %v211 = vld [vmem:[%s59 + $0x3a8] sm:$0xff]
  %v212 = vld [vmem:[%s59 + $0x3b0] sm:$0xff]
  %v213 = vld [vmem:[%s59 + $0x3b8] sm:$0xff]
  %v214 = vld [vmem:[%s59 + $0x3c0] sm:$0xff]
  %v215 = vld [vmem:[%s59 + $0x3c8] sm:$0xff]
  %v216 = vld [vmem:[%s59 + $0x3d0] sm:$0xff]
  %v217 = vld [vmem:[%s59 + $0x3d8] sm:$0xff]
  %v218 = vld [vmem:[%s59 + $0x3e0] sm:$0xff]
  %v219 = vld [vmem:[%s59 + $0x3e8] sm:$0xff]
  %v220 = vld [vmem:[%s59 + $0x3f0] sm:$0xff]
  %v221 = vld [vmem:[%s59 + $0x3f8] sm:$0xff]
  %v222 = vld [vmem:[%s59 + $0x400] sm:$0xff]
  %v223 = vld [vmem:[%s59 + $0x408] sm:$0xff]
  %v224 = vld [vmem:[%s59 + $0x410] sm:$0xff]
  %v225 = vld [vmem:[%s59 + $0x418] sm:$0xff]
  %v226 = vld [vmem:[%s59 + $0x420] sm:$0xff]
  %v227 = vld [vmem:[%s59 + $0x428] sm:$0xff]
  %v228 = vld [vmem:[%s59 + $0x430] sm:$0xff]
  %v229 = vld [vmem:[%s59 + $0x438] sm:$0xff]
  %v230 = vld [vmem:[%s59 + $0x440] sm:$0xff]
  %v231 = vld [vmem:[%s59 + $0x448] sm:$0xff]
  %v232 = vld [vmem:[%s59 + $0x450] sm:$0xff]
  %v233 = vld [vmem:[%s59 + $0x458] sm:$0xff]
  %v234 = vld [vmem:[%s59 + $0x460] sm:$0xff]
  %v235 = vld [vmem:[%s59 + $0x468] sm:$0xff]
  %v236 = vld [vmem:[%s59 + $0x470] sm:$0xff]
  %v237 = vld [vmem:[%s59 + $0x478] sm:$0xff]
  %v238 = vld [vmem:[%s59 + $0x480] sm:$0xff]
  %v239 = vld [vmem:[%s59 + $0x488] sm:$0xff]
  %v240 = vld [vmem:[%s59 + $0x490] sm:$0xff]
  %v241 = vld [vmem:[%s59 + $0x498] sm:$0xff]
  %v242 = vld [vmem:[%s59 + $0x4a0] sm:$0xff]
  %v243 = vld [vmem:[%s59 + $0x4a8] sm:$0xff]
  %v244 = vld [vmem:[%s59 + $0x4b0] sm:$0xff]
  %v245 = vld [vmem:[%s59 + $0x4b8] sm:$0xff]
  %v246 = vld [vmem:[%s59 + $0x4c0] sm:$0xff]
  %v247 = vld [vmem:[%s59 + $0x4c8] sm:$0xff]
  %v248 = vld [vmem:[%s59 + $0x4d0] sm:$0xff]
  %v249 = vld [vmem:[%s59 + $0x4d8] sm:$0xff]
  %v250 = vld [vmem:[%s59 + $0x4e0] sm:$0xff]
  %v251 = vld [vmem:[%s59 + $0x4e8] sm:$0xff]
  %v252 = vld [vmem:[%s59 + $0x4f0] sm:$0xff]
  %v253 = vld [vmem:[%s59 + $0x4f8] sm:$0xff]
  %v254 = vld [vmem:[%s59 + $0x500] sm:$0xff]
  %v255 = vld [vmem:[%s59 + $0x508] sm:$0xff]
  %v256 = vld [vmem:[%s59 + $0x510] sm:$0xff]
  %v257 = vld [vmem:[%s59 + $0x518] sm:$0xff]
  %v258 = vld [vmem:[%s59 + $0x520] sm:$0xff]
  %v259 = vld [vmem:[%s59 + $0x528] sm:$0xff]
  %v260 = vld [vmem:[%s59 + $0x530] sm:$0xff]
  %v261 = vld [vmem:[%s59 + $0x538] sm:$0xff]
  %v262 = vld [vmem:[%s59 + $0x540] sm:$0xff]
  %v263 = vld [vmem:[%s59 + $0x548] sm:$0xff]
  %v264 = vld [vmem:[%s59 + $0x550] sm:$0xff]
  %v265 = vld [vmem:[%s59 + $0x558] sm:$0xff]
  %v266 = vld [vmem:[%s59 + $0x560] sm:$0xff]
  %v267 = vld [vmem:[%s59 + $0x568] sm:$0xff]
  %v268 = vld [vmem:[%s59 + $0x570] sm:$0xff]
  %v269 = vld [vmem:[%s59 + $0x578] sm:$0xff]
  %v270 = vld [vmem:[%s59 + $0x580] sm:$0xff]
  %v271 = vld [vmem:[%s59 + $0x588] sm:$0xff]
  %v272 = vld [vmem:[%s59 + $0x590] sm:$0xff]
  %v273 = vld [vmem:[%s59 + $0x598] sm:$0xff]
  %v274 = vld [vmem:[%s59 + $0x5a0] sm:$0xff]
  %v275 = vld [vmem:[%s59 + $0x5a8] sm:$0xff]
  %v276 = vld [vmem:[%s59 + $0x5b0] sm:$0xff]
  %v277 = vld [vmem:[%s59 + $0x5b8] sm:$0xff]
  %v278 = vld [vmem:[%s59 + $0x5c0] sm:$0xff]
  %v279 = vld [vmem:[%s59 + $0x5c8] sm:$0xff]
  %v280 = vld [vmem:[%s59 + $0x5d0] sm:$0xff]
  %v281 = vld [vmem:[%s59 + $0x5d8] sm:$0xff]
  %v282 = vld [vmem:[%s59 + $0x5e0] sm:$0xff]
  %v283 = vld [vmem:[%s59 + $0x5e8] sm:$0xff]
  %v284 = vld [vmem:[%s59 + $0x5f0] sm:$0xff]
  %v285 = vld [vmem:[%s59 + $0x5f8] sm:$0xff]
  %286 = vmatprep.subr.mxu0 %v125
  %287 = vmatpush1.msra.mxu0 %v124
  %288 = vmatprep.subr.mxu0 %v123
  %289 = vmatpush1.msra.mxu0 %v122
  %290 = vmatprep.subr.mxu0 %v121
  %291 = vmatpush1.msra.mxu0 %v120
  %292 = vmatprep.subr.mxu0 %v119
  %293 = vmatpush1.msra.mxu0 %v118
  %294 = vmatprep.subr.mxu0 %v117
  %295 = vmatpush1.msra.mxu0 %v116
  %296 = vmatprep.subr.mxu0 %v115
  %297 = vmatpush1.msra.mxu0 %v114
  %298 = vmatprep.subr.mxu0 %v113
  %299 = vmatpush1.msra.mxu0 %v112
  %300 = vmatprep.subr.mxu0 %v111
  %301 = vmatpush1.msra.mxu0 %v110
  %302 = vmatprep.subr.mxu0 %v109
  %303 = vmatpush1.msra.mxu0 %v108
  %304 = vmatprep.subr.mxu0 %v107
  %305 = vmatpush1.msra.mxu0 %v106
  %306 = vmatprep.subr.mxu0 %v105
  %307 = vmatpush1.msra.mxu0 %v104
  %308 = vmatprep.subr.mxu0 %v103
  %309 = vmatpush1.msra.mxu0 %v102
  %310 = vmatprep.subr.mxu0 %v101
  %311 = vmatpush1.msra.mxu0 %v100
  %312 = vmatprep.subr.mxu0 %v99
  %313 = vmatpush1.msra.mxu0 %v98
  %314 = vmatprep.subr.mxu0 %v97
  %315 = vmatpush1.msra.mxu0 %v96
  %316 = vmatprep.subr.mxu0 %v95
  %317 = vmatpush1.msra.mxu0 %v94
  %318 = vmatprep.subr.mxu0 %v157
  %319 = vmatpush2.msra.mxu0 %v156
  %320 = vmatprep.subr.mxu0 %v155
  %321 = vmatpush2.msra.mxu0 %v154
  %322 = vmatprep.subr.mxu0 %v153
  %323 = vmatpush2.msra.mxu0 %v152
  %324 = vmatprep.subr.mxu0 %v151
  %325 = vmatpush2.msra.mxu0 %v150
  %326 = vmatprep.subr.mxu0 %v149
  %327 = vmatpush2.msra.mxu0 %v148
  %328 = vmatprep.subr.mxu0 %v147
  %329 = vmatpush2.msra.mxu0 %v146
  %330 = vmatprep.subr.mxu0 %v145
  %331 = vmatpush2.msra.mxu0 %v144
  %332 = vmatprep.subr.mxu0 %v143
  %333 = vmatpush2.msra.mxu0 %v142
  %334 = vmatprep.subr.mxu0 %v141
  %335 = vmatpush2.msra.mxu0 %v140
  %336 = vmatprep.subr.mxu0 %v139
  %337 = vmatpush2.msra.mxu0 %v138
  %338 = vmatprep.subr.mxu0 %v137
  %339 = vmatpush2.msra.mxu0 %v136
  %340 = vmatprep.subr.mxu0 %v135
  %341 = vmatpush2.msra.mxu0 %v134
  %342 = vmatprep.subr.mxu0 %v133
  %343 = vmatpush2.msra.mxu0 %v132
  %344 = vmatprep.subr.mxu0 %v131
  %345 = vmatpush2.msra.mxu0 %v130
  %346 = vmatprep.subr.mxu0 %v129
  %347 = vmatpush2.msra.mxu0 %v128
  %348 = vmatprep.subr.mxu0 %v127
  %349 = vmatpush2.msra.mxu0 %v126
  %350 = vmatprep.mubr.f32.mxu0 %v71
  %351 = vmatmul.mubr.f32.gmra.mxu0 %v70
  %v352 = vpop.f32.mrf.mxu0
  %v353 = vadd.f32 0.0, %v352
  %v354 = vpop.f32.mrf.mxu0
  %v355 = vadd.f32 0.0, %v354
  %356 = vmatprep.mubr.f32.mxu0 %v77
  %357 = vmatmul.mubr.f32.gmra.mxu0 %v76
  %v358 = vpop.f32.mrf.mxu0
  %v359 = vadd.f32 0.0, %v358
  %v360 = vpop.f32.mrf.mxu0
  %v361 = vadd.f32 0.0, %v360
  %362 = vmatprep.mubr.f32.mxu0 %v83
  %363 = vmatmul.mubr.f32.gmra.mxu0 %v82
  %v364 = vpop.f32.mrf.mxu0
  %v365 = vadd.f32 0.0, %v364
  %v366 = vpop.f32.mrf.mxu0
  %v367 = vadd.f32 0.0, %v366
  %368 = vmatprep.mubr.f32.mxu0 %v89
  %369 = vmatmul.mubr.f32.gmra.mxu0 %v88
  %v370 = vpop.f32.mrf.mxu0
  %v371 = vadd.f32 0.0, %v370
  %v372 = vpop.f32.mrf.mxu0
  %v373 = vadd.f32 0.0, %v372
  %374 = vdwg.mxu0
  %375 = vmatprep.subr.mxu0 %v189
  %376 = vmatpush1.msra.mxu0 %v188
  %377 = vmatprep.subr.mxu0 %v187
  %378 = vmatpush1.msra.mxu0 %v186
  %379 = vmatprep.subr.mxu0 %v185
  %380 = vmatpush1.msra.mxu0 %v184
  %381 = vmatprep.subr.mxu0 %v183
  %382 = vmatpush1.msra.mxu0 %v182
  %383 = vmatprep.subr.mxu0 %v181
  %384 = vmatpush1.msra.mxu0 %v180
  %385 = vmatprep.subr.mxu0 %v179
  %386 = vmatpush1.msra.mxu0 %v178
  %387 = vmatprep.subr.mxu0 %v177
  %388 = vmatpush1.msra.mxu0 %v176
  %389 = vmatprep.subr.mxu0 %v175
  %390 = vmatpush1.msra.mxu0 %v174
  %391 = vmatprep.subr.mxu0 %v173
  %392 = vmatpush1.msra.mxu0 %v172
  %393 = vmatprep.subr.mxu0 %v171
  %394 = vmatpush1.msra.mxu0 %v170
  %395 = vmatprep.subr.mxu0 %v169
  %396 = vmatpush1.msra.mxu0 %v168
  %397 = vmatprep.subr.mxu0 %v167
  %398 = vmatpush1.msra.mxu0 %v166
  %399 = vmatprep.subr.mxu0 %v165
  %400 = vmatpush1.msra.mxu0 %v164
  %401 = vmatprep.subr.mxu0 %v163
  %402 = vmatpush1.msra.mxu0 %v162
  %403 = vmatprep.subr.mxu0 %v161
  %404 = vmatpush1.msra.mxu0 %v160
  %405 = vmatprep.subr.mxu0 %v159
  %406 = vmatpush1.msra.mxu0 %v158
  %407 = vmatprep.subr.mxu0 %v221
  %408 = vmatpush2.msra.mxu0 %v220
  %409 = vmatprep.subr.mxu0 %v219
  %410 = vmatpush2.msra.mxu0 %v218
  %411 = vmatprep.subr.mxu0 %v217
  %412 = vmatpush2.msra.mxu0 %v216
  %413 = vmatprep.subr.mxu0 %v215
  %414 = vmatpush2.msra.mxu0 %v214
  %415 = vmatprep.subr.mxu0 %v213
  %416 = vmatpush2.msra.mxu0 %v212
  %417 = vmatprep.subr.mxu0 %v211
  %418 = vmatpush2.msra.mxu0 %v210
  %419 = vmatprep.subr.mxu0 %v209
  %420 = vmatpush2.msra.mxu0 %v208
  %421 = vmatprep.subr.mxu0 %v207
  %422 = vmatpush2.msra.mxu0 %v206
  %423 = vmatprep.subr.mxu0 %v205
  %424 = vmatpush2.msra.mxu0 %v204
  %425 = vmatprep.subr.mxu0 %v203
  %426 = vmatpush2.msra.mxu0 %v202
  %427 = vmatprep.subr.mxu0 %v201
  %428 = vmatpush2.msra.mxu0 %v200
  %429 = vmatprep.subr.mxu0 %v199
  %430 = vmatpush2.msra.mxu0 %v198
  %431 = vmatprep.subr.mxu0 %v197
  %432 = vmatpush2.msra.mxu0 %v196
  %433 = vmatprep.subr.mxu0 %v195
  %434 = vmatpush2.msra.mxu0 %v194
  %435 = vmatprep.subr.mxu0 %v193
  %436 = vmatpush2.msra.mxu0 %v192
  %437 = vmatprep.subr.mxu0 %v191
  %438 = vmatpush2.msra.mxu0 %v190
  %439 = vmatprep.mubr.f32.mxu0 %v73
  %440 = vmatmul.mubr.f32.gmra.mxu0 %v72
  %v441 = vpop.f32.mrf.mxu0
  %v442 = vadd.f32 %v353, %v441
  %v443 = vpop.f32.mrf.mxu0
  %v444 = vadd.f32 %v355, %v443
  %445 = vmatprep.mubr.f32.mxu0 %v79
  %446 = vmatmul.mubr.f32.gmra.mxu0 %v78
  %v447 = vpop.f32.mrf.mxu0
  %v448 = vadd.f32 %v359, %v447
  %v449 = vpop.f32.mrf.mxu0
  %v450 = vadd.f32 %v361, %v449
  %451 = vmatprep.mubr.f32.mxu0 %v85
  %452 = vmatmul.mubr.f32.gmra.mxu0 %v84
  %v453 = vpop.f32.mrf.mxu0
  %v454 = vadd.f32 %v365, %v453
  %v455 = vpop.f32.mrf.mxu0
  %v456 = vadd.f32 %v367, %v455
  %457 = vmatprep.mubr.f32.mxu0 %v91
  %458 = vmatmul.mubr.f32.gmra.mxu0 %v90
  %v459 = vpop.f32.mrf.mxu0
  %v460 = vadd.f32 %v371, %v459
  %v461 = vpop.f32.mrf.mxu0
  %v462 = vadd.f32 %v373, %v461
  %463 = vdwg.mxu0
  %464 = vmatprep.subr.mxu0 %v253
  %465 = vmatpush1.msra.mxu0 %v252
  %466 = vmatprep.subr.mxu0 %v251
  %467 = vmatpush1.msra.mxu0 %v250
  %468 = vmatprep.subr.mxu0 %v249
  %469 = vmatpush1.msra.mxu0 %v248
  %470 = vmatprep.subr.mxu0 %v247
  %471 = vmatpush1.msra.mxu0 %v246
  %472 = vmatprep.subr.mxu0 %v245
  %473 = vmatpush1.msra.mxu0 %v244
  %474 = vmatprep.subr.mxu0 %v243
  %475 = vmatpush1.msra.mxu0 %v242
  %476 = vmatprep.subr.mxu0 %v241
  %477 = vmatpush1.msra.mxu0 %v240
  %478 = vmatprep.subr.mxu0 %v239
  %479 = vmatpush1.msra.mxu0 %v238
  %480 = vmatprep.subr.mxu0 %v237
  %481 = vmatpush1.msra.mxu0 %v236
  %482 = vmatprep.subr.mxu0 %v235
  %483 = vmatpush1.msra.mxu0 %v234
  %484 = vmatprep.subr.mxu0 %v233
  %485 = vmatpush1.msra.mxu0 %v232
  %486 = vmatprep.subr.mxu0 %v231
  %487 = vmatpush1.msra.mxu0 %v230
  %488 = vmatprep.subr.mxu0 %v229
  %489 = vmatpush1.msra.mxu0 %v228
  %490 = vmatprep.subr.mxu0 %v227
  %491 = vmatpush1.msra.mxu0 %v226
  %492 = vmatprep.subr.mxu0 %v225
  %493 = vmatpush1.msra.mxu0 %v224
  %494 = vmatprep.subr.mxu0 %v223
  %495 = vmatpush1.msra.mxu0 %v222
  %496 = vmatprep.subr.mxu0 %v285
  %497 = vmatpush2.msra.mxu0 %v284
  %498 = vmatprep.subr.mxu0 %v283
  %499 = vmatpush2.msra.mxu0 %v282
  %500 = vmatprep.subr.mxu0 %v281
  %501 = vmatpush2.msra.mxu0 %v280
  %502 = vmatprep.subr.mxu0 %v279
  %503 = vmatpush2.msra.mxu0 %v278
  %504 = vmatprep.subr.mxu0 %v277
  %505 = vmatpush2.msra.mxu0 %v276
  %506 = vmatprep.subr.mxu0 %v275
  %507 = vmatpush2.msra.mxu0 %v274
  %508 = vmatprep.subr.mxu0 %v273
  %509 = vmatpush2.msra.mxu0 %v272
  %510 = vmatprep.subr.mxu0 %v271
  %511 = vmatpush2.msra.mxu0 %v270
  %512 = vmatprep.subr.mxu0 %v269
  %513 = vmatpush2.msra.mxu0 %v268
  %514 = vmatprep.subr.mxu0 %v267
  %515 = vmatpush2.msra.mxu0 %v266
  %516 = vmatprep.subr.mxu0 %v265
  %517 = vmatpush2.msra.mxu0 %v264
  %518 = vmatprep.subr.mxu0 %v263
  %519 = vmatpush2.msra.mxu0 %v262
  %520 = vmatprep.subr.mxu0 %v261
  %521 = vmatpush2.msra.mxu0 %v260
  %522 = vmatprep.subr.mxu0 %v259
  %523 = vmatpush2.msra.mxu0 %v258
  %524 = vmatprep.subr.mxu0 %v257
  %525 = vmatpush2.msra.mxu0 %v256
  %526 = vmatprep.subr.mxu0 %v255
  %527 = vmatpush2.msra.mxu0 %v254
  %528 = vmatprep.mubr.f32.mxu0 %v75
  %529 = vmatmul.mubr.f32.gmra.mxu0 %v74
  %v530 = vpop.f32.mrf.mxu0
  %v531 = vadd.f32 %v442, %v530
  %v532 = vpop.f32.mrf.mxu0
  %v533 = vadd.f32 %v444, %v532
  %534 = vmatprep.mubr.f32.mxu0 %v81
  %535 = vmatmul.mubr.f32.gmra.mxu0 %v80
  %v536 = vpop.f32.mrf.mxu0
  %v537 = vadd.f32 %v448, %v536
  %v538 = vpop.f32.mrf.mxu0
  %v539 = vadd.f32 %v450, %v538
  %540 = vmatprep.mubr.f32.mxu0 %v87
  %541 = vmatmul.mubr.f32.gmra.mxu0 %v86
  %v542 = vpop.f32.mrf.mxu0
  %v543 = vadd.f32 %v454, %v542
  %v544 = vpop.f32.mrf.mxu0
  %v545 = vadd.f32 %v456, %v544
  %546 = vmatprep.mubr.f32.mxu0 %v93
  %547 = vmatmul.mubr.f32.gmra.mxu0 %v92
  %v548 = vpop.f32.mrf.mxu0
  %v549 = vadd.f32 %v460, %v548
  %v550 = vpop.f32.mrf.mxu0
  %v551 = vadd.f32 %v462, %v550
  %552 = vdwg.mxu0
  %v553 = vmax.f32 %v531, 0.0
  %v554 = vmax.f32 %v533, 0.0
  %v555 = vmax.f32 %v537, 0.0
  %v556 = vmax.f32 %v539, 0.0
  %v557 = vmax.f32 %v543, 0.0
  %v558 = vmax.f32 %v545, 0.0
  %v559 = vmax.f32 %v549, 0.0
  %v560 = vmax.f32 %v551, 0.0
  %v561 = vld [vmem:[%s1] sm:$0xff]
  %v562 = vld [vmem:[%s1 + $0x8] sm:$0xff]
  %v563 = vld [vmem:[%s1 + $0x10] sm:$0xff]
  %v564 = vld [vmem:[%s1 + $0x18] sm:$0xff]
  %vm565 = vcmask 261120
  %v567 = vsel %vm565, %v561, 0
  %v570 = vsel %vm565, %v562, 0
  %v573 = vsel %vm565, %v563, 0
  %v576 = vsel %vm565, %v564, 0
  %578 = vmatprep.subr.mxu0 0.0
  %579 = vmatpush1.msra.mxu0 0.0
  %580 = vmatprep.subr.mxu0 0.0
  %581 = vmatpush1.msra.mxu0 0.0
  %582 = vmatprep.subr.mxu0 0.0
  %583 = vmatpush1.msra.mxu0 0.0
  %584 = vmatprep.subr.mxu0 0.0
  %585 = vmatpush1.msra.mxu0 0.0
  %586 = vmatprep.subr.mxu0 0.0
  %587 = vmatpush1.msra.mxu0 0.0
  %588 = vmatprep.subr.mxu0 0.0
  %589 = vmatpush1.msra.mxu0 0.0
  %590 = vmatprep.subr.mxu0 0.0
  %591 = vmatpush1.msra.mxu0 0.0
  %592 = vmatprep.subr.mxu0 0.0
  %593 = vmatpush1.msra.mxu0 0.0
  %594 = vmatprep.subr.mxu0 0.0
  %595 = vmatpush1.msra.mxu0 0.0
  %596 = vmatprep.subr.mxu0 0.0
  %597 = vmatpush1.msra.mxu0 0.0
  %598 = vmatprep.subr.mxu0 0.0
  %599 = vmatpush1.msra.mxu0 0.0
  %600 = vmatprep.subr.mxu0 0.0
  %601 = vmatpush1.msra.mxu0 0.0
  %602 = vmatprep.subr.mxu0 %v560
  %603 = vmatpush1.msra.mxu0 %v559
  %604 = vmatprep.subr.mxu0 %v558
  %605 = vmatpush1.msra.mxu0 %v557
  %606 = vmatprep.subr.mxu0 %v556
  %607 = vmatpush1.msra.mxu0 %v555
  %608 = vmatprep.subr.mxu0 %v554
  %609 = vmatpush1.msra.mxu0 %v553
  %610 = vmatprep.subr.mxu0 0.0
  %611 = vmatpush2.msra.mxu0 0.0
  %612 = vmatprep.subr.mxu0 0.0
  %613 = vmatpush2.msra.mxu0 0.0
  %614 = vmatprep.subr.mxu0 0.0
  %615 = vmatpush2.msra.mxu0 0.0
  %616 = vmatprep.subr.mxu0 0.0
  %617 = vmatpush2.msra.mxu0 0.0
  %618 = vmatprep.subr.mxu0 0.0
  %619 = vmatpush2.msra.mxu0 0.0
  %620 = vmatprep.subr.mxu0 0.0
  %621 = vmatpush2.msra.mxu0 0.0
  %622 = vmatprep.subr.mxu0 0.0
  %623 = vmatpush2.msra.mxu0 0.0
  %624 = vmatprep.subr.mxu0 0.0
  %625 = vmatpush2.msra.mxu0 0.0
  %626 = vmatprep.subr.mxu0 0.0
  %627 = vmatpush2.msra.mxu0 0.0
  %628 = vmatprep.subr.mxu0 0.0
  %629 = vmatpush2.msra.mxu0 0.0
  %630 = vmatprep.subr.mxu0 0.0
  %631 = vmatpush2.msra.mxu0 0.0
  %632 = vmatprep.subr.mxu0 0.0
  %633 = vmatpush2.msra.mxu0 0.0
  %634 = vmatprep.subr.mxu0 0.0
  %635 = vmatpush2.msra.mxu0 0.0
  %636 = vmatprep.subr.mxu0 0.0
  %637 = vmatpush2.msra.mxu0 0.0
  %638 = vmatprep.subr.mxu0 0.0
  %639 = vmatpush2.msra.mxu0 0.0
  %640 = vmatprep.subr.mxu0 0.0
  %641 = vmatpush2.msra.mxu0 0.0
  %642 = vmatprep.mubr.f32.mxu0 0.0
  %643 = vmatmul.mubr.f32.gmra.mxu0 %v567
  %v644 = vpop.f32.mrf.mxu0
  %v645 = vadd.f32 0.0, %v644
  %v646 = vpop.f32.mrf.mxu0
  %v647 = vadd.f32 0.0, %v646
  %648 = vmatprep.mubr.f32.mxu0 0.0
  %649 = vmatmul.mubr.f32.gmra.mxu0 %v570
  %v650 = vpop.f32.mrf.mxu0
  %v651 = vadd.f32 0.0, %v650
  %v652 = vpop.f32.mrf.mxu0
  %v653 = vadd.f32 0.0, %v652
  %654 = vmatprep.mubr.f32.mxu0 0.0
  %655 = vmatmul.mubr.f32.gmra.mxu0 %v573
  %v656 = vpop.f32.mrf.mxu0
  %v657 = vadd.f32 0.0, %v656
  %v658 = vpop.f32.mrf.mxu0
  %v659 = vadd.f32 0.0, %v658
  %660 = vmatprep.mubr.f32.mxu0 0.0
  %661 = vmatmul.mubr.f32.gmra.mxu0 %v576
  %v662 = vpop.f32.mrf.mxu0
  %v663 = vadd.f32 0.0, %v662
  %v664 = vpop.f32.mrf.mxu0
  %v665 = vadd.f32 0.0, %v664
  %666 = vdwg.mxu0
  %v667 = vmax.f32 %v645, 0.0
  %v668 = vmax.f32 %v647, 0.0
  %v669 = vmax.f32 %v651, 0.0
  %v670 = vmax.f32 %v653, 0.0
  %v671 = vmax.f32 %v657, 0.0
  %v672 = vmax.f32 %v659, 0.0
  %v673 = vmax.f32 %v663, 0.0
  %v674 = vmax.f32 %v665, 0.0
  %v675 = vld [vmem:[%s2] sm:$0xff]
  %v676 = vld [vmem:[%s2 + $0x8] sm:$0xff]
  %v677 = vld [vmem:[%s2 + $0x10] sm:$0xff]
  %v678 = vld [vmem:[%s2 + $0x18] sm:$0xff]
  %v680 = vsel %vm565, %v675, 0
  %v683 = vsel %vm565, %v676, 0
  %v686 = vsel %vm565, %v677, 0
  %v689 = vsel %vm565, %v678, 0
  %691 = vmatprep.subr.mxu0 0.0
  %692 = vmatpush1.msra.mxu0 0.0
  %693 = vmatprep.subr.mxu0 0.0
  %694 = vmatpush1.msra.mxu0 0.0
  %695 = vmatprep.subr.mxu0 0.0
  %696 = vmatpush1.msra.mxu0 0.0
  %697 = vmatprep.subr.mxu0 0.0
  %698 = vmatpush1.msra.mxu0 0.0
  %699 = vmatprep.subr.mxu0 0.0
  %700 = vmatpush1.msra.mxu0 0.0
  %701 = vmatprep.subr.mxu0 0.0
  %702 = vmatpush1.msra.mxu0 0.0
  %703 = vmatprep.subr.mxu0 0.0
  %704 = vmatpush1.msra.mxu0 0.0
  %705 = vmatprep.subr.mxu0 0.0
  %706 = vmatpush1.msra.mxu0 0.0
  %707 = vmatprep.subr.mxu0 0.0
  %708 = vmatpush1.msra.mxu0 0.0
  %709 = vmatprep.subr.mxu0 0.0
  %710 = vmatpush1.msra.mxu0 0.0
  %711 = vmatprep.subr.mxu0 0.0
  %712 = vmatpush1.msra.mxu0 0.0
  %713 = vmatprep.subr.mxu0 0.0
  %714 = vmatpush1.msra.mxu0 0.0
  %715 = vmatprep.subr.mxu0 %v674
  %716 = vmatpush1.msra.mxu0 %v673
  %717 = vmatprep.subr.mxu0 %v672
  %718 = vmatpush1.msra.mxu0 %v671
  %719 = vmatprep.subr.mxu0 %v670
  %720 = vmatpush1.msra.mxu0 %v669
  %721 = vmatprep.subr.mxu0 %v668
  %722 = vmatpush1.msra.mxu0 %v667
  %723 = vmatprep.subr.mxu0 0.0
  %724 = vmatpush2.msra.mxu0 0.0
  %725 = vmatprep.subr.mxu0 0.0
  %726 = vmatpush2.msra.mxu0 0.0
  %727 = vmatprep.subr.mxu0 0.0
  %728 = vmatpush2.msra.mxu0 0.0
  %729 = vmatprep.subr.mxu0 0.0
  %730 = vmatpush2.msra.mxu0 0.0
  %731 = vmatprep.subr.mxu0 0.0
  %732 = vmatpush2.msra.mxu0 0.0
  %733 = vmatprep.subr.mxu0 0.0
  %734 = vmatpush2.msra.mxu0 0.0
  %735 = vmatprep.subr.mxu0 0.0
  %736 = vmatpush2.msra.mxu0 0.0
  %737 = vmatprep.subr.mxu0 0.0
  %738 = vmatpush2.msra.mxu0 0.0
  %739 = vmatprep.subr.mxu0 0.0
  %740 = vmatpush2.msra.mxu0 0.0
  %741 = vmatprep.subr.mxu0 0.0
  %742 = vmatpush2.msra.mxu0 0.0
  %743 = vmatprep.subr.mxu0 0.0
  %744 = vmatpush2.msra.mxu0 0.0
  %745 = vmatprep.subr.mxu0 0.0
  %746 = vmatpush2.msra.mxu0 0.0
  %747 = vmatprep.subr.mxu0 0.0
  %748 = vmatpush2.msra.mxu0 0.0
  %749 = vmatprep.subr.mxu0 0.0
  %750 = vmatpush2.msra.mxu0 0.0
  %751 = vmatprep.subr.mxu0 0.0
  %752 = vmatpush2.msra.mxu0 0.0
  %753 = vmatprep.subr.mxu0 0.0
  %754 = vmatpush2.msra.mxu0 0.0
  %755 = vmatprep.mubr.f32.mxu0 0.0
  %756 = vmatmul.mubr.f32.gmra.mxu0 %v680
  %v757 = vpop.f32.mrf.mxu0
  %v758 = vadd.f32 0.0, %v757
  %v759 = vpop.f32.mrf.mxu0
  %v760 = vadd.f32 0.0, %v759
  %761 = vmatprep.mubr.f32.mxu0 0.0
  %762 = vmatmul.mubr.f32.gmra.mxu0 %v683
  %v763 = vpop.f32.mrf.mxu0
  %v764 = vadd.f32 0.0, %v763
  %v765 = vpop.f32.mrf.mxu0
  %v766 = vadd.f32 0.0, %v765
  %767 = vmatprep.mubr.f32.mxu0 0.0
  %768 = vmatmul.mubr.f32.gmra.mxu0 %v686
  %v769 = vpop.f32.mrf.mxu0
  %v770 = vadd.f32 0.0, %v769
  %v771 = vpop.f32.mrf.mxu0
  %v772 = vadd.f32 0.0, %v771
  %773 = vmatprep.mubr.f32.mxu0 0.0
  %774 = vmatmul.mubr.f32.gmra.mxu0 %v689
  %v775 = vpop.f32.mrf.mxu0
  %v776 = vadd.f32 0.0, %v775
  %v777 = vpop.f32.mrf.mxu0
  %v778 = vadd.f32 0.0, %v777
  %779 = vdwg.mxu0
  %v780 = vmax.f32 %v758, 0.0
  %v781 = vmax.f32 %v760, 0.0
  %v782 = vmax.f32 %v764, 0.0
  %v783 = vmax.f32 %v766, 0.0
  %v784 = vmax.f32 %v770, 0.0
  %v785 = vmax.f32 %v772, 0.0
  %v786 = vmax.f32 %v776, 0.0
  %v787 = vmax.f32 %v778, 0.0
  %v788 = vld [vmem:[%s3] sm:$0xff]
  %v789 = vld [vmem:[%s3 + $0x8] sm:$0xff]
  %v790 = vld [vmem:[%s3 + $0x10] sm:$0xff]
  %v791 = vld [vmem:[%s3 + $0x18] sm:$0xff]
  %v793 = vsel %vm565, %v788, 0
  %v796 = vsel %vm565, %v789, 0
  %v799 = vsel %vm565, %v790, 0
  %v802 = vsel %vm565, %v791, 0
  %804 = vmatprep.subr.mxu0 0.0
  %805 = vmatpush1.msra.mxu0 0.0
  %806 = vmatprep.subr.mxu0 0.0
  %807 = vmatpush1.msra.mxu0 0.0
  %808 = vmatprep.subr.mxu0 0.0
  %809 = vmatpush1.msra.mxu0 0.0
  %810 = vmatprep.subr.mxu0 0.0
  %811 = vmatpush1.msra.mxu0 0.0
  %812 = vmatprep.subr.mxu0 0.0
  %813 = vmatpush1.msra.mxu0 0.0
  %814 = vmatprep.subr.mxu0 0.0
  %815 = vmatpush1.msra.mxu0 0.0
  %816 = vmatprep.subr.mxu0 0.0
  %817 = vmatpush1.msra.mxu0 0.0
  %818 = vmatprep.subr.mxu0 0.0
  %819 = vmatpush1.msra.mxu0 0.0
  %820 = vmatprep.subr.mxu0 0.0
  %821 = vmatpush1.msra.mxu0 0.0
  %822 = vmatprep.subr.mxu0 0.0
  %823 = vmatpush1.msra.mxu0 0.0
  %824 = vmatprep.subr.mxu0 0.0
  %825 = vmatpush1.msra.mxu0 0.0
  %826 = vmatprep.subr.mxu0 0.0
  %827 = vmatpush1.msra.mxu0 0.0
  %828 = vmatprep.subr.mxu0 %v787
  %829 = vmatpush1.msra.mxu0 %v786
  %830 = vmatprep.subr.mxu0 %v785
  %831 = vmatpush1.msra.mxu0 %v784
  %832 = vmatprep.subr.mxu0 %v783
  %833 = vmatpush1.msra.mxu0 %v782
  %834 = vmatprep.subr.mxu0 %v781
  %835 = vmatpush1.msra.mxu0 %v780
  %836 = vmatprep.subr.mxu0 0.0
  %837 = vmatpush2.msra.mxu0 0.0
  %838 = vmatprep.subr.mxu0 0.0
  %839 = vmatpush2.msra.mxu0 0.0
  %840 = vmatprep.subr.mxu0 0.0
  %841 = vmatpush2.msra.mxu0 0.0
  %842 = vmatprep.subr.mxu0 0.0
  %843 = vmatpush2.msra.mxu0 0.0
  %844 = vmatprep.subr.mxu0 0.0
  %845 = vmatpush2.msra.mxu0 0.0
  %846 = vmatprep.subr.mxu0 0.0
  %847 = vmatpush2.msra.mxu0 0.0
  %848 = vmatprep.subr.mxu0 0.0
  %849 = vmatpush2.msra.mxu0 0.0
  %850 = vmatprep.subr.mxu0 0.0
  %851 = vmatpush2.msra.mxu0 0.0
  %852 = vmatprep.subr.mxu0 0.0
  %853 = vmatpush2.msra.mxu0 0.0
  %854 = vmatprep.subr.mxu0 0.0
  %855 = vmatpush2.msra.mxu0 0.0
  %856 = vmatprep.subr.mxu0 0.0
  %857 = vmatpush2.msra.mxu0 0.0
  %858 = vmatprep.subr.mxu0 0.0
  %859 = vmatpush2.msra.mxu0 0.0
  %860 = vmatprep.subr.mxu0 0.0
  %861 = vmatpush2.msra.mxu0 0.0
  %862 = vmatprep.subr.mxu0 0.0
  %863 = vmatpush2.msra.mxu0 0.0
  %864 = vmatprep.subr.mxu0 0.0
  %865 = vmatpush2.msra.mxu0 0.0
  %866 = vmatprep.subr.mxu0 0.0
  %867 = vmatpush2.msra.mxu0 0.0
  %868 = vmatprep.mubr.f32.mxu0 0.0
  %869 = vmatmul.mubr.f32.gmra.mxu0 %v793
  %v870 = vpop.f32.mrf.mxu0
  %v871 = vadd.f32 0.0, %v870
  %v872 = vpop.f32.mrf.mxu0
  %v873 = vadd.f32 0.0, %v872
  %874 = vmatprep.mubr.f32.mxu0 0.0
  %875 = vmatmul.mubr.f32.gmra.mxu0 %v796
  %v876 = vpop.f32.mrf.mxu0
  %v877 = vadd.f32 0.0, %v876
  %v878 = vpop.f32.mrf.mxu0
  %v879 = vadd.f32 0.0, %v878
  %880 = vmatprep.mubr.f32.mxu0 0.0
  %881 = vmatmul.mubr.f32.gmra.mxu0 %v799
  %v882 = vpop.f32.mrf.mxu0
  %v883 = vadd.f32 0.0, %v882
  %v884 = vpop.f32.mrf.mxu0
  %v885 = vadd.f32 0.0, %v884
  %886 = vmatprep.mubr.f32.mxu0 0.0
  %887 = vmatmul.mubr.f32.gmra.mxu0 %v802
  %v888 = vpop.f32.mrf.mxu0
  %v889 = vadd.f32 0.0, %v888
  %v890 = vpop.f32.mrf.mxu0
  %v891 = vadd.f32 0.0, %v890
  %892 = vdwg.mxu0
  %v893 = vmax.f32 %v871, 0.0
  %v894 = vmax.f32 %v873, 0.0
  %v895 = vmax.f32 %v877, 0.0
  %v896 = vmax.f32 %v879, 0.0
  %v897 = vmax.f32 %v883, 0.0
  %v898 = vmax.f32 %v885, 0.0
  %v899 = vmax.f32 %v889, 0.0
  %v900 = vmax.f32 %v891, 0.0
  %v901 = vadd.f32 %v893, %v667
  %v902 = vadd.f32 %v894, %v668
  %v903 = vadd.f32 %v895, %v669
  %v904 = vadd.f32 %v896, %v670
  %v905 = vadd.f32 %v897, %v671
  %v906 = vadd.f32 %v898, %v672
  %v907 = vadd.f32 %v899, %v673
  %v908 = vadd.f32 %v900, %v674
  %v909 = vld [vmem:[%s4] sm:$0xff]
  %v910 = vld [vmem:[%s4 + $0x8] sm:$0xff]
  %v911 = vld [vmem:[%s4 + $0x10] sm:$0xff]
  %v912 = vld [vmem:[%s4 + $0x18] sm:$0xff]
  %v914 = vsel %vm565, %v909, 0
  %v917 = vsel %vm565, %v910, 0
  %v920 = vsel %vm565, %v911, 0
  %v923 = vsel %vm565, %v912, 0
  %925 = vmatprep.subr.mxu0 0.0
  %926 = vmatpush1.msra.mxu0 0.0
  %927 = vmatprep.subr.mxu0 0.0
  %928 = vmatpush1.msra.mxu0 0.0
  %929 = vmatprep.subr.mxu0 0.0
  %930 = vmatpush1.msra.mxu0 0.0
  %931 = vmatprep.subr.mxu0 0.0
  %932 = vmatpush1.msra.mxu0 0.0
  %933 = vmatprep.subr.mxu0 0.0
  %934 = vmatpush1.msra.mxu0 0.0
  %935 = vmatprep.subr.mxu0 0.0
  %936 = vmatpush1.msra.mxu0 0.0
  %937 = vmatprep.subr.mxu0 0.0
  %938 = vmatpush1.msra.mxu0 0.0
  %939 = vmatprep.subr.mxu0 0.0
  %940 = vmatpush1.msra.mxu0 0.0
  %941 = vmatprep.subr.mxu0 0.0
  %942 = vmatpush1.msra.mxu0 0.0
  %943 = vmatprep.subr.mxu0 0.0
  %944 = vmatpush1.msra.mxu0 0.0
  %945 = vmatprep.subr.mxu0 0.0
  %946 = vmatpush1.msra.mxu0 0.0
  %947 = vmatprep.subr.mxu0 0.0
  %948 = vmatpush1.msra.mxu0 0.0
  %949 = vmatprep.subr.mxu0 %v908
  %950 = vmatpush1.msra.mxu0 %v907
  %951 = vmatprep.subr.mxu0 %v906
  %952 = vmatpush1.msra.mxu0 %v905
  %953 = vmatprep.subr.mxu0 %v904
  %954 = vmatpush1.msra.mxu0 %v903
  %955 = vmatprep.subr.mxu0 %v902
  %956 = vmatpush1.msra.mxu0 %v901
  %957 = vmatprep.subr.mxu0 0.0
  %958 = vmatpush2.msra.mxu0 0.0
  %959 = vmatprep.subr.mxu0 0.0
  %960 = vmatpush2.msra.mxu0 0.0
  %961 = vmatprep.subr.mxu0 0.0
  %962 = vmatpush2.msra.mxu0 0.0
  %963 = vmatprep.subr.mxu0 0.0
  %964 = vmatpush2.msra.mxu0 0.0
  %965 = vmatprep.subr.mxu0 0.0
  %966 = vmatpush2.msra.mxu0 0.0
  %967 = vmatprep.subr.mxu0 0.0
  %968 = vmatpush2.msra.mxu0 0.0
  %969 = vmatprep.subr.mxu0 0.0
  %970 = vmatpush2.msra.mxu0 0.0
  %971 = vmatprep.subr.mxu0 0.0
  %972 = vmatpush2.msra.mxu0 0.0
  %973 = vmatprep.subr.mxu0 0.0
  %974 = vmatpush2.msra.mxu0 0.0
  %975 = vmatprep.subr.mxu0 0.0
  %976 = vmatpush2.msra.mxu0 0.0
  %977 = vmatprep.subr.mxu0 0.0
  %978 = vmatpush2.msra.mxu0 0.0
  %979 = vmatprep.subr.mxu0 0.0
  %980 = vmatpush2.msra.mxu0 0.0
  %981 = vmatprep.subr.mxu0 0.0
  %982 = vmatpush2.msra.mxu0 0.0
  %983 = vmatprep.subr.mxu0 0.0
  %984 = vmatpush2.msra.mxu0 0.0
  %985 = vmatprep.subr.mxu0 0.0
  %986 = vmatpush2.msra.mxu0 0.0
  %987 = vmatprep.subr.mxu0 0.0
  %988 = vmatpush2.msra.mxu0 0.0
  %989 = vmatprep.mubr.f32.mxu0 0.0
  %990 = vmatmul.mubr.f32.gmra.mxu0 %v914
  %v991 = vpop.f32.mrf.mxu0
  %v992 = vadd.f32 0.0, %v991
  %v993 = vpop.f32.mrf.mxu0
  %v994 = vadd.f32 0.0, %v993
  %995 = vmatprep.mubr.f32.mxu0 0.0
  %996 = vmatmul.mubr.f32.gmra.mxu0 %v917
  %v997 = vpop.f32.mrf.mxu0
  %v998 = vadd.f32 0.0, %v997
  %v999 = vpop.f32.mrf.mxu0
  %v1000 = vadd.f32 0.0, %v999
  %1001 = vmatprep.mubr.f32.mxu0 0.0
  %1002 = vmatmul.mubr.f32.gmra.mxu0 %v920
  %v1003 = vpop.f32.mrf.mxu0
  %v1004 = vadd.f32 0.0, %v1003
  %v1005 = vpop.f32.mrf.mxu0
  %v1006 = vadd.f32 0.0, %v1005
  %1007 = vmatprep.mubr.f32.mxu0 0.0
  %1008 = vmatmul.mubr.f32.gmra.mxu0 %v923
  %v1009 = vpop.f32.mrf.mxu0
  %v1010 = vadd.f32 0.0, %v1009
  %v1011 = vpop.f32.mrf.mxu0
  %v1012 = vadd.f32 0.0, %v1011
  %1013 = vdwg.mxu0
  %v1014 = vmax.f32 %v992, 0.0
  %v1015 = vmax.f32 %v994, 0.0
  %v1016 = vmax.f32 %v998, 0.0
  %v1017 = vmax.f32 %v1000, 0.0
  %v1018 = vmax.f32 %v1004, 0.0
  %v1019 = vmax.f32 %v1006, 0.0
  %v1020 = vmax.f32 %v1010, 0.0
  %v1021 = vmax.f32 %v1012, 0.0
  %v1022 = vadd.f32 %v1014, %v553
  %v1023 = vadd.f32 %v1015, %v554
  %v1024 = vadd.f32 %v1016, %v555
  %v1025 = vadd.f32 %v1017, %v556
  %v1026 = vadd.f32 %v1018, %v557
  %v1027 = vadd.f32 %v1019, %v558
  %v1028 = vadd.f32 %v1020, %v559
  %v1029 = vadd.f32 %v1021, %v560
  %v1030 = vld [vmem:[%s67] sm:$0xff]
  %v1031 = vld [vmem:[%s67 + $0x8] sm:$0xff]
  %v1032 = vld [vmem:[%s67 + $0x10] sm:$0xff]
  %v1033 = vld [vmem:[%s67 + $0x18] sm:$0xff]
  %v1034 = vld [vmem:[%s67 + $0x20] sm:$0xff]
  %v1035 = vld [vmem:[%s67 + $0x28] sm:$0xff]
  %v1036 = vld [vmem:[%s67 + $0x30] sm:$0xff]
  %v1037 = vld [vmem:[%s67 + $0x38] sm:$0xff]
  %v1038 = vld [vmem:[%s67 + $0x40] sm:$0xff]
  %v1039 = vld [vmem:[%s67 + $0x48] sm:$0xff]
  %v1040 = vld [vmem:[%s67 + $0x50] sm:$0xff]
  %v1041 = vld [vmem:[%s67 + $0x58] sm:$0xff]
  %v1042 = vld [vmem:[%s67 + $0x60] sm:$0xff]
  %v1043 = vld [vmem:[%s67 + $0x68] sm:$0xff]
  %v1044 = vld [vmem:[%s67 + $0x70] sm:$0xff]
  %v1045 = vld [vmem:[%s67 + $0x78] sm:$0xff]
  %v1046 = vld [vmem:[%s67 + $0x80] sm:$0xff]
  %v1047 = vld [vmem:[%s67 + $0x88] sm:$0xff]
  %v1048 = vld [vmem:[%s67 + $0x90] sm:$0xff]
  %v1049 = vld [vmem:[%s67 + $0x98] sm:$0xff]
  %v1050 = vld [vmem:[%s67 + $0xa0] sm:$0xff]
  %v1051 = vld [vmem:[%s67 + $0xa8] sm:$0xff]
  %v1052 = vld [vmem:[%s67 + $0xb0] sm:$0xff]
  %v1053 = vld [vmem:[%s67 + $0xb8] sm:$0xff]
  %v1054 = vld [vmem:[%s67 + $0xc0] sm:$0xff]
  %v1055 = vld [vmem:[%s67 + $0xc8] sm:$0xff]
  %v1056 = vld [vmem:[%s67 + $0xd0] sm:$0xff]
  %v1057 = vld [vmem:[%s67 + $0xd8] sm:$0xff]
  %v1058 = vld [vmem:[%s67 + $0xe0] sm:$0xff]
  %v1059 = vld [vmem:[%s67 + $0xe8] sm:$0xff]
  %v1060 = vld [vmem:[%s67 + $0xf0] sm:$0xff]
  %v1061 = vld [vmem:[%s67 + $0xf8] sm:$0xff]
  %1062 = vmatprep.subr.mxu0 0.0
  %1063 = vmatpush1.msra.mxu0 %v1045
  %1064 = vmatprep.subr.mxu0 0.0
  %1065 = vmatpush1.msra.mxu0 %v1044
  %1066 = vmatprep.subr.mxu0 0.0
  %1067 = vmatpush1.msra.mxu0 %v1043
  %1068 = vmatprep.subr.mxu0 0.0
  %1069 = vmatpush1.msra.mxu0 %v1042
  %1070 = vmatprep.subr.mxu0 0.0
  %1071 = vmatpush1.msra.mxu0 %v1041
  %1072 = vmatprep.subr.mxu0 0.0
  %1073 = vmatpush1.msra.mxu0 %v1040
  %1074 = vmatprep.subr.mxu0 0.0
  %1075 = vmatpush1.msra.mxu0 %v1039
  %1076 = vmatprep.subr.mxu0 0.0
  %1077 = vmatpush1.msra.mxu0 %v1038
  %1078 = vmatprep.subr.mxu0 0.0
  %1079 = vmatpush1.msra.mxu0 %v1037
  %1080 = vmatprep.subr.mxu0 0.0
  %1081 = vmatpush1.msra.mxu0 %v1036
  %1082 = vmatprep.subr.mxu0 0.0
  %1083 = vmatpush1.msra.mxu0 %v1035
  %1084 = vmatprep.subr.mxu0 0.0
  %1085 = vmatpush1.msra.mxu0 %v1034
  %1086 = vmatprep.subr.mxu0 0.0
  %1087 = vmatpush1.msra.mxu0 %v1033
  %1088 = vmatprep.subr.mxu0 0.0
  %1089 = vmatpush1.msra.mxu0 %v1032
  %1090 = vmatprep.subr.mxu0 0.0
  %1091 = vmatpush1.msra.mxu0 %v1031
  %1092 = vmatprep.subr.mxu0 0.0
  %1093 = vmatpush1.msra.mxu0 %v1030
  %1094 = vmatprep.subr.mxu0 0.0
  %1095 = vmatpush2.msra.mxu0 %v1061
  %1096 = vmatprep.subr.mxu0 0.0
  %1097 = vmatpush2.msra.mxu0 %v1060
  %1098 = vmatprep.subr.mxu0 0.0
  %1099 = vmatpush2.msra.mxu0 %v1059
  %1100 = vmatprep.subr.mxu0 0.0
  %1101 = vmatpush2.msra.mxu0 %v1058
  %1102 = vmatprep.subr.mxu0 0.0
  %1103 = vmatpush2.msra.mxu0 %v1057
  %1104 = vmatprep.subr.mxu0 0.0
  %1105 = vmatpush2.msra.mxu0 %v1056
  %1106 = vmatprep.subr.mxu0 0.0
  %1107 = vmatpush2.msra.mxu0 %v1055
  %1108 = vmatprep.subr.mxu0 0.0
  %1109 = vmatpush2.msra.mxu0 %v1054
  %1110 = vmatprep.subr.mxu0 0.0
  %1111 = vmatpush2.msra.mxu0 %v1053
  %1112 = vmatprep.subr.mxu0 0.0
  %1113 = vmatpush2.msra.mxu0 %v1052
  %1114 = vmatprep.subr.mxu0 0.0
  %1115 = vmatpush2.msra.mxu0 %v1051
  %1116 = vmatprep.subr.mxu0 0.0
  %1117 = vmatpush2.msra.mxu0 %v1050
  %1118 = vmatprep.subr.mxu0 0.0
  %1119 = vmatpush2.msra.mxu0 %v1049
  %1120 = vmatprep.subr.mxu0 0.0
  %1121 = vmatpush2.msra.mxu0 %v1048
  %1122 = vmatprep.subr.mxu0 0.0
  %1123 = vmatpush2.msra.mxu0 %v1047
  %1124 = vmatprep.subr.mxu0 0.0
  %1125 = vmatpush2.msra.mxu0 %v1046
  %1126 = vmatprep.mubr.f32.mxu0 %v1023
  %1127 = vmatmul.mubr.f32.gmra.mxu0 %v1022
  %v1128 = vpop.f32.mrf.mxu0
  %v1129 = vadd.f32 0.0, %v1128
  %v1130 = vpop.f32.mrf.mxu0
  %1131 = vmatprep.mubr.f32.mxu0 %v1025
  %1132 = vmatmul.mubr.f32.gmra.mxu0 %v1024
  %v1133 = vpop.f32.mrf.mxu0
  %v1134 = vadd.f32 0.0, %v1133
  %v1135 = vpop.f32.mrf.mxu0
  %1136 = vmatprep.mubr.f32.mxu0 %v1027
  %1137 = vmatmul.mubr.f32.gmra.mxu0 %v1026
  %v1138 = vpop.f32.mrf.mxu0
  %v1139 = vadd.f32 0.0, %v1138
  %v1140 = vpop.f32.mrf.mxu0
  %1141 = vmatprep.mubr.f32.mxu0 %v1029
  %1142 = vmatmul.mubr.f32.gmra.mxu0 %v1028
  %v1143 = vpop.f32.mrf.mxu0
  %v1144 = vadd.f32 0.0, %v1143
  %v1145 = vpop.f32.mrf.mxu0
  %1146 = vdwg.mxu0
  %p1147 = scmp.eq.s32.totalorder 0, 0
  // Predicated region
  $region30: #{neat_forward.1} parent=0 // pred_check
    %p1148 = pneg %p1147
  $region31: #{neat_forward.1} parent=0 // pred_check_branch
    %1150 = sbr.rel (%p1148) target = $region33
  $region32: #{neat_forward.1} parent=0 // pred_region
    %vm1151 = vcmask 64512
    %1152 = vst.msk [vmem:[%s7] sm:$0xff] %vm1151, %v1129
    %1153 = vst.msk [vmem:[%s7 + $0x8] sm:$0xff] %vm1151, %v1134
    %1154 = vst.msk [vmem:[%s7 + $0x10] sm:$0xff] %vm1151, %v1139
    %1155 = vst.msk [vmem:[%s7 + $0x18] sm:$0xff] %vm1151, %v1144
  $region33: #{neat_forward.1} parent=0 // pred_fallthru
    _
  %p1156 = scmp.ne.s32.totalorder 0, 0
  // Predicated region
  $region34: #{neat_forward.1} parent=0 // pred_check
    %p1157 = pneg %p1156
  $region35: #{neat_forward.1} parent=0 // pred_check_branch
    %1159 = sbr.rel (%p1157) target = $region37
  $region36: #{neat_forward.1} parent=0 // pred_region
    %v1160 = vld [vmem:[%s7] sm:$0xff]
    %v1161 = vld [vmem:[%s7 + $0x8] sm:$0xff]
    %v1162 = vld [vmem:[%s7 + $0x10] sm:$0xff]
    %v1163 = vld [vmem:[%s7 + $0x18] sm:$0xff]
    %v1164 = vadd.f32 %v1160, %v1129
    %v1165 = vadd.f32 %v1161, %v1134
    %v1166 = vadd.f32 %v1162, %v1139
    %v1167 = vadd.f32 %v1163, %v1144
    %vm1168 = vcmask 64512
    %1169 = vst.msk [vmem:[%s7] sm:$0xff] %vm1168, %v1164
    %1170 = vst.msk [vmem:[%s7 + $0x8] sm:$0xff] %vm1168, %v1165
    %1171 = vst.msk [vmem:[%s7 + $0x10] sm:$0xff] %vm1168, %v1166
    %1172 = vst.msk [vmem:[%s7 + $0x18] sm:$0xff] %vm1168, %v1167
  $region37: #{neat_forward.1} parent=0 // pred_fallthru
    _
  // Predicated region
  $region38: #{neat_forward.1} parent=0 // pred_check
    _
  $region39: #{neat_forward.1} parent=0 // pred_check_branch
    %1174 = sbr.rel (0) target = $region41
  $region40: #{neat_forward.1} parent=0 // pred_region
    _
  $region41: #{neat_forward.1} parent=0 // pred_fallthru
    _
  // Predicated region
  $region42: #{neat_forward.1} parent=0 // pred_check
    _
  $region43: #{neat_forward.1} parent=0 // pred_check_branch
    %1176 = sbr.rel (0) target = $region45
  $region44: #{neat_forward.1} parent=0 // pred_region
    _
  $region45: #{neat_forward.1} parent=0 // pred_fallthru
    _

</llo_original>
